<compile_context>
chip_gen: v7x
topology: tpu7x:2x2x1
jax: 0.10.0
libtpu: 0.0.40
codegen_flags: <defaults>
</compile_context>

<pallas_src>
import functools
import math

import jax
import jax.numpy as jnp
import numpy as np
from jax.experimental import pallas as pl
from jax.experimental.pallas import tpu as pltpu

TOK_MAX = 256      # tokens per grid step (128-512 sweet spot; 256 also fits v5e)
NSLOTS_MAX = 16    # max outstanding gather DMAs (one DMA semaphore per slot)


def _round_up(x, m):
    return ((x + m - 1) // m) * m


def _vmem_budget_bytes():
    """~Half of physical VMEM (v7x: 32 MiB, v5e/v6e: 64 MiB), with fallback."""
    try:
        cap = int(pltpu.get_tpu_info().vmem_capacity_bytes)
    except Exception:
        cap = 64 << 20
    return max(16 << 20, cap // 2)


def _vmem_limit_bytes(needed, budget):
    return int(min(max(2 * needed, 16 << 20), budget))


# --------------------------- kernel A: VMEM-resident table -------------------
def _onehot_kernel(vocab, scale, ids_ref, table_ref, out_ref):
    # ids_ref:   (1, 1, TOK) int32 (VMEM)
    # table_ref: (vocab, d_model) resident in VMEM (fetched from HBM once)
    # out_ref:   (TOK, d_model)
    ids = jnp.clip(ids_ref[0, 0, :], 0, vocab - 1)                 # (TOK,)
    tok = ids.shape[0]
    cols = jax.lax.broadcasted_iota(jnp.int32, (tok, vocab), 1)
    onehot = (ids[:, None] == cols).astype(table_ref.dtype)        # (TOK, vocab)
    rows = jnp.dot(onehot, table_ref[...],
                   precision=jax.lax.Precision.HIGHEST,            # exact select
                   preferred_element_type=jnp.float32)
    out_ref[...] = (rows * scale).astype(out_ref.dtype)


# --------------------------- kernel B: HBM manual gather ---------------------
def _gather_kernel(vocab, scale, nslots,
                   ids_ref, table_hbm, out_ref, staging, sems):
    # ids_ref:   (1, TOK) int32 in SMEM (per-block)
    # table_hbm: (vocab, d_model) raw HBM ref (memory_space=pl.ANY)
    # staging:   (TOK, d_model) VMEM scratch — gather DMAs land here
    # sems:      (nslots,) DMA semaphores — nslots DMAs in flight
    tok = staging.shape[0]

    def issue(k):
        row = jnp.clip(ids_ref[0, k], 0, vocab - 1)
        pltpu.make_async_copy(table_hbm.at[row], staging.at[k],
                              sems.at[k % nslots]).start()

    def wait(k):
        # Row index in src is irrelevant for wait(); only sizes matter.
        pltpu.make_async_copy(table_hbm.at[0], staging.at[k],
                              sems.at[k % nslots]).wait()

    @pl.loop(0, nslots)           # prime: nslots DMAs in flight
    def _(k):
        issue(k)

    @pl.loop(nslots, tok)         # steady state: wait one, issue one
    def _(k):
        wait(k - nslots)
        issue(k)

    @pl.loop(tok - nslots, tok)   # drain
    def _(k):
        wait(k)

    out_ref[...] = staging[...] * scale    # one vmul + one dense store


# --------------------------- wrapper -----------------------------------------
def embeddings_forward(ids, table, *, force_hbm_gather=False):
    """Pallas equivalent of: nn.Embedding(vocab, d_model)(ids) * sqrt(d_model)."""
    vocab, d_model = table.shape
    scale = float(math.sqrt(d_model))          # compile-time constant

    orig_shape = ids.shape
    flat = jnp.reshape(ids, (-1,)).astype(jnp.int32)
    n_tok = int(flat.shape[0])

    itemsize = jnp.dtype(table.dtype).itemsize
    tok_align = 16 if itemsize < 4 else 8      # fill packed sublanes for bf16
    tok = int(min(TOK_MAX, _round_up(max(n_tok, 1), tok_align)))
    n_total = _round_up(n_tok, tok)
    pad = n_total - n_tok
    if pad:
        flat = jnp.concatenate([flat, jnp.zeros((pad,), jnp.int32)])
    n_steps = n_total // tok

    budget = _vmem_budget_bytes()
    table_bytes = vocab * d_model * itemsize
    use_fast = ((not force_hbm_gather)
                and vocab <= 2048
                and table_bytes <= min(budget // 4, 8 << 20))

    cost = pl.CostEstimate(
        flops=2 * n_tok * d_model,
        transcendentals=0,
        bytes_accessed=int(2 * n_tok * d_model * itemsize + n_tok * 4),
    )
    out_shape = jax.ShapeDtypeStruct((n_total, d_model), table.dtype)

    if use_fast:
        ids3 = flat.reshape(n_steps, 1, tok)
        needed = table_bytes + 4 * tok * d_model * itemsize + (1 << 20)
        out = pl.pallas_call(
            functools.partial(_onehot_kernel, vocab, scale),
            grid=(n_steps,),
            in_specs=[
                pl.BlockSpec((1, 1, tok), lambda i: (i, 0, 0)),
                pl.BlockSpec((vocab, d_model), lambda i: (0, 0)),  # resident
            ],
            out_specs=pl.BlockSpec((tok, d_model), lambda i: (i, 0)),
            out_shape=out_shape,
            compiler_params=pltpu.CompilerParams(
                dimension_semantics=("parallel",),
                vmem_limit_bytes=_vmem_limit_bytes(needed, budget)),
            cost_estimate=cost,
        )(ids3, table)
    else:
        ids2 = flat.reshape(n_steps, tok)
        nslots = int(min(NSLOTS_MAX, tok))
        needed = 3 * tok * d_model * itemsize + (1 << 20)
        out = pl.pallas_call(
            functools.partial(_gather_kernel, vocab, scale, nslots),
            grid=(n_steps,),
            in_specs=[
                pl.BlockSpec((1, tok), lambda i: (i, 0),
                             memory_space=pltpu.MemorySpace.SMEM),
                pl.BlockSpec(memory_space=pl.ANY),                 # table in HBM
            ],
            out_specs=pl.BlockSpec((tok, d_model), lambda i: (i, 0)),
            out_shape=out_shape,
            scratch_shapes=[
                pltpu.VMEM((tok, d_model), table.dtype),
                pltpu.SemaphoreType.DMA((nslots,)),
            ],
            compiler_params=pltpu.CompilerParams(
                dimension_semantics=("parallel",),
                vmem_limit_bytes=_vmem_limit_bytes(needed, budget)),
            cost_estimate=cost,
        )(ids2, table)

    out = out[:n_tok]
    return out.reshape(orig_shape + (d_model,))


# --------------------------- pure-JAX reference -------------------------------
def embeddings_ref(ids, table):
    _, d_model = table.shape
    return jnp.take(table, ids, axis=0) * math.sqrt(d_model)


# ------------------------------------------------------------------------------
if __name__ == "__main__":
    vocab, d_model = 64, 128
    batch, seq = 2, 8

    key = jax.random.PRNGKey(0)
    k_ids, k_tab = jax.random.split(key)

    ids = jax.random.randint(k_ids, (batch, seq), 0, vocab, dtype=jnp.int32)
    table = jax.random.normal(k_tab, (vocab, d_model), jnp.float32)

    ref = jax.block_until_ready(embeddings_ref(ids, table))

    # Fast path (VMEM-resident table, one-hot @ table on the MXU).
    out_fast = jax.block_until_ready(embeddings_forward(ids, table))
    assert out_fast.shape == (batch, seq, d_model)
    np.testing.assert_allclose(np.asarray(out_fast), np.asarray(ref),
                               rtol=1e-5, atol=1e-5)

    # General path (HBM table + batched manual row-gather DMAs).
    out_gather = jax.block_until_ready(
        embeddings_forward(ids, table, force_hbm_gather=True))
    assert out_gather.shape == (batch, seq, d_model)
    np.testing.assert_allclose(np.asarray(out_gather), np.asarray(ref),
                               rtol=1e-6, atol=1e-6)

    print("KERNEL_OK")
</pallas_src>

<mosaic_0001>
module attributes {stable_mosaic.version = 11 : i64} {
  func.func @_onehot_kernel(%arg0: i32, %arg1: memref<1x1x16xi32, #tpu.memory_space<vmem>>, %arg2: memref<64x128xf32, #tpu.memory_space<vmem>>, %arg3: memref<16x128xf32, #tpu.memory_space<vmem>>) attributes {dimension_semantics = [#tpu.dimension_semantics<parallel>], iteration_bounds = array<i64: 1>, scalar_prefetch = 0 : i64, scratch_operands = 0 : i64, tpu.core_type = #tpu.core_type<tc>, window_params = [{transform_indices = @transform_0, window_bounds = array<i64: 1, 1, 16>}, {pipeline_mode = #tpu.pipeline_mode<synchronous>, transform_indices = @transform_1, window_bounds = array<i64: 64, 128>}, {transform_indices = @transform_2, window_bounds = array<i64: 16, 128>}]} {
    %c0 = arith.constant 0 : index
    %c0_0 = arith.constant 0 : index
    %c0_1 = arith.constant 0 : index
    %0 = vector.load %arg1[%c0, %c0_0, %c0_1] : memref<1x1x16xi32, #tpu.memory_space<vmem>>, vector<1x1x16xi32>
    %1 = vector.shape_cast %0 : vector<1x1x16xi32> to vector<16xi32>
    %c0_i32 = arith.constant 0 : i32
    %c63_i32 = arith.constant 63 : i32
    %2 = vector.broadcast %c0_i32 : i32 to vector<16xi32>
    %3 = arith.maxsi %2, %1 : vector<16xi32>
    %4 = vector.broadcast %c63_i32 : i32 to vector<16xi32>
    %5 = arith.minsi %4, %3 : vector<16xi32>
    %6 = tpu.iota {dimensions = array<i32: 1>} : vector<16x64xi32>
    %7 = vector.shape_cast %5 : vector<16xi32> to vector<16x1xi32>
    %8 = vector.broadcast %7 : vector<16x1xi32> to vector<16x64xi32>
    %9 = arith.cmpi eq, %8, %6 : vector<16x64xi32>
    %10 = arith.extui %9 : vector<16x64xi1> to vector<16x64xi32>
    %11 = arith.sitofp %10 : vector<16x64xi32> to vector<16x64xf32>
    %c0_2 = arith.constant 0 : index
    %c0_3 = arith.constant 0 : index
    %12 = vector.load %arg2[%c0_2, %c0_3] : memref<64x128xf32, #tpu.memory_space<vmem>>, vector<64x128xf32>
    %cst = arith.constant dense<0.000000e+00> : vector<16x128xf32>
    %13 = tpu.matmul %11, %12, %cst {dimension_numbers = #tpu.dot_dimension_numbers<[1], [0], [0], [1], [0, 0, 1, 1], [], []>, precision = #tpu.contract_precision<fp32>} : vector<16x64xf32>, vector<64x128xf32>, vector<16x128xf32> -> vector<16x128xf32>
    %cst_4 = arith.constant 11.3137083 : f32
    %14 = vector.broadcast %cst_4 : f32 to vector<16x128xf32>
    %15 = arith.mulf %13, %14 : vector<16x128xf32>
    %c0_5 = arith.constant 0 : index
    %c0_6 = arith.constant 0 : index
    %16 = vector.load %arg3[%c0_5, %c0_6] : memref<16x128xf32, #tpu.memory_space<vmem>>, vector<16x128xf32>
    tpu.vector_store %arg3[%c0_5, %c0_6], %15 {strides = array<i32>} : memref<16x128xf32, #tpu.memory_space<vmem>>, vector<16x128xf32>,
    return
  }
  func.func @transform_0(%arg0: i32) -> (i32, i32, i32) {
    %c0_i32 = arith.constant 0 : i32
    %c0_i32_0 = arith.constant 0 : i32
    %c0_i32_1 = arith.constant 0 : i32
    return %arg0, %c0_i32, %c0_i32_0 : i32, i32, i32
  }
  func.func @transform_1(%arg0: i32) -> (i32, i32) {
    %c0_i32 = arith.constant 0 : i32
    %c0_i32_0 = arith.constant 0 : i32
    %c0_i32_1 = arith.constant 0 : i32
    return %c0_i32, %c0_i32_0 : i32, i32
  }
  func.func @transform_2(%arg0: i32) -> (i32, i32) {
    %c0_i32 = arith.constant 0 : i32
    %c0_i32_0 = arith.constant 0 : i32
    return %arg0, %c0_i32 : i32, i32
  }
}

</mosaic_0001>

<llo_original>
// kernel: tpu_custom_call.1
$region0: #{tpu_custom_call.1}
  #allocation0 [shape = 'u32[]', space=smem, size = 0x4, offset = 0x4, fixed_abs, tag = 'smem constant byte address 0x4 - core index']
  #allocation1 [shape = 'u32[144,128]{1,0:T(1,128)}', space=vmem, size = 0x12000, scoped, tag = 'internal scratch']
  %s0 = inlined_call_operand.hbm [shape: s32[1,1,16], index: 0, kind: input, shape index: {}]
  %s1 = inlined_call_operand.hbm [shape: f32[64,128], index: 1, kind: input, shape index: {}]
  %s2 = inlined_call_operand.hbm [shape: f32[16,128], index: 2, kind: output, shape index: {}]
  %s3 = sld [smem:[#allocation0]]
  $region26: #{tpu_custom_call.1} parent=0
    _
  %s5 = ssub.s32 1, %s3
  %s6 = scalar_select 0, %s5, %s3
  $region1: #{tpu_custom_call.1} parent=0
    #allocation2 [shape = 'u8[512]{0}', space=vmem, size = 0x400, scoped, tag = 'input window, operand 0, single buffered']
    #allocation3 [shape = 's32[1]{0}', space=sflag, size = 0x4, scoped, tag = 'scoped memory for tpu_custom_call.1']
    #allocation4 [shape = 's32[1]{0}', space=sflag, size = 0x4, scoped, tag = 'scoped memory for tpu_custom_call.1']
    #allocation5 [shape = 'u8[32768]{0}', space=vmem, size = 0x8000, scoped, tag = 'input window, operand 1, single buffered']
    #allocation6 [shape = 's32[1]{0}', space=sflag, size = 0x4, scoped, tag = 'scoped memory for tpu_custom_call.1']
    #allocation7 [shape = 'u8[8192]{0}', space=vmem, size = 0x2000, scoped, tag = 'output window, operand 0, single buffered']
    %7 = vsyncpa [#allocation3], 0
    %8 = vsyncpa [#allocation6], 0
    %9 = vsyncpa [#allocation4], 0
    // Predicated region
    $region2: #{tpu_custom_call.1} parent=1 // pred_check
      _
    $region3: #{tpu_custom_call.1} parent=1 // pred_check_branch
      %11 = sbr.rel (0) target = $region5
    $region4: #{tpu_custom_call.1} parent=1 // pred_region
      %s13 = ssub.s32 16, 16
      %14 = vsyncadd [#allocation3], %s13
      %s16 = sshll.u32 [#allocation2], 4
      %s17 = int_to_ptr.vmem [resolvable:$true] %s16
      %19 = dma.hbm_to_vmem [thread:$0]  %s0, 16, %s17, [#allocation3]
    $region5: #{tpu_custom_call.1} parent=1 // pred_fallthru
      _
    // Predicated region
    $region6: #{tpu_custom_call.1} parent=1 // pred_check
      _
    $region7: #{tpu_custom_call.1} parent=1 // pred_check_branch
      %21 = sbr.rel (0) target = $region9
    $region8: #{tpu_custom_call.1} parent=1 // pred_region
      %s23 = ssub.s32 1024, 1024
      %24 = vsyncadd [#allocation6], %s23
      %s25 = sshll.u32 [#allocation5], 4
      %s26 = int_to_ptr.vmem [resolvable:$true] %s25
      %31 = dma.hbm_to_vmem [thread:$0]  %s1, 1024, %s26, [#allocation6], 128, 128, 8
    $region9: #{tpu_custom_call.1} parent=1 // pred_fallthru
      _
    // Predicated region
    $region10: #{tpu_custom_call.1} parent=1 // pred_check
      _
    $region11: #{tpu_custom_call.1} parent=1 // pred_check_branch
      %33 = sbr.rel (0) target = $region13
    $region12: #{tpu_custom_call.1} parent=1 // pred_region
      %34 = dma.done [#allocation3], 16
    $region13: #{tpu_custom_call.1} parent=1 // pred_fallthru
      _
    // Predicated region
    $region14: #{tpu_custom_call.1} parent=1 // pred_check
      _
    $region15: #{tpu_custom_call.1} parent=1 // pred_check_branch
      %36 = sbr.rel (0) target = $region17
    $region16: #{tpu_custom_call.1} parent=1 // pred_region
      %37 = dma.done [#allocation6], 1024
    $region17: #{tpu_custom_call.1} parent=1 // pred_fallthru
      _
    %v38 = vld [vmem:[#allocation2] sm:$0x1]
    %vm39 = vcmp.gt.s32.totalorder %v38, 0
    %v40 = vsel %vm39, %v38, 0
    %vm41 = vcmp.lt.s32.totalorder %v40, 63
    %v42 = vsel %vm41, %v40, 63
    %v43 = vlaneseq
    %v44 = vand.u32 %v43, 127
    %v45 = vlaneseq
    %v46 = vshrl.u32 %v45, 7
    %v47 = vsub.s32 0, %v46
    %v48 = vrot.slane %v42, %v47
    %50 = vbcast.lane.b32.xlu0 %v48, 256
    %v51 = vpop.permute.xlu0 %50
    %s53 = sor.u32 256, 8
    %54 = vbcast.lane.b32.xlu0 %v48, %s53
    %v55 = vpop.permute.xlu0 %54
    %vm56 = vcmp.eq.s32.totalorder %v51, %v44
    %vm57 = vcmp.eq.s32.totalorder %v55, %v44
    %v58 = vsel %vm56, 1, 0
    %v59 = vsel %vm57, 1, 0
    %v60 = vcvt.s32.f32 %v58
    %v61 = vcvt.s32.f32 %v59
    %v62 = vld [vmem:[#allocation5] sm:$0xff]
    %v63 = vld [vmem:[#allocation5 + $0x8] sm:$0xff]
    %v64 = vld [vmem:[#allocation5 + $0x10] sm:$0xff]
    %v65 = vld [vmem:[#allocation5 + $0x18] sm:$0xff]
    %v66 = vld [vmem:[#allocation5 + $0x20] sm:$0xff]
    %v67 = vld [vmem:[#allocation5 + $0x28] sm:$0xff]
    %v68 = vld [vmem:[#allocation5 + $0x30] sm:$0xff]
    %v69 = vld [vmem:[#allocation5 + $0x38] sm:$0xff]
    %vm70 = vcmask 523264
    %v72 = vsel %vm70, %v60, 0
    %v75 = vsel %vm70, %v61, 0
    %77 = vmatprep.subr.mxu0 0.0
    %v78 = vand.u32 %v62, 4294901760
    %79 = vmatpush1.msra.mxu0 %v78
    %80 = vmatprep.subr.mxu0 0.0
    %v81 = vand.u32 %v63, 4294901760
    %82 = vmatpush1.msra.mxu0 %v81
    %83 = vmatprep.subr.mxu0 0.0
    %v84 = vand.u32 %v64, 4294901760
    %85 = vmatpush1.msra.mxu0 %v84
    %86 = vmatprep.subr.mxu0 0.0
    %v87 = vand.u32 %v65, 4294901760
    %88 = vmatpush1.msra.mxu0 %v87
    %89 = vmatprep.subr.mxu0 0.0
    %v90 = vand.u32 %v66, 4294901760
    %91 = vmatpush1.msra.mxu0 %v90
    %92 = vmatprep.subr.mxu0 0.0
    %v93 = vand.u32 %v67, 4294901760
    %94 = vmatpush1.msra.mxu0 %v93
    %95 = vmatprep.subr.mxu0 0.0
    %v96 = vand.u32 %v68, 4294901760
    %97 = vmatpush1.msra.mxu0 %v96
    %98 = vmatprep.subr.mxu0 0.0
    %v99 = vand.u32 %v69, 4294901760
    %100 = vmatpush1.msra.mxu0 %v99
    %101 = vmatprep.subr.mxu0 0.0
    %102 = vmatpush1.msra.mxu0 0.0
    %103 = vmatprep.subr.mxu0 0.0
    %104 = vmatpush1.msra.mxu0 0.0
    %105 = vmatprep.subr.mxu0 0.0
    %106 = vmatpush1.msra.mxu0 0.0
    %107 = vmatprep.subr.mxu0 0.0
    %108 = vmatpush1.msra.mxu0 0.0
    %109 = vmatprep.subr.mxu0 0.0
    %110 = vmatpush1.msra.mxu0 0.0
    %111 = vmatprep.subr.mxu0 0.0
    %112 = vmatpush1.msra.mxu0 0.0
    %113 = vmatprep.subr.mxu0 0.0
    %114 = vmatpush1.msra.mxu0 0.0
    %115 = vmatprep.subr.mxu0 0.0
    %116 = vmatpush1.msra.mxu0 0.0
    %117 = vmatprep.subr.mxu0 0.0
    %118 = vmatpush1.msra.mxu0 0.0
    %119 = vmatprep.subr.mxu0 0.0
    %120 = vmatpush1.msra.mxu0 0.0
    %121 = vmatprep.subr.mxu0 0.0
    %122 = vmatpush1.msra.mxu0 0.0
    %123 = vmatprep.subr.mxu0 0.0
    %124 = vmatpush1.msra.mxu0 0.0
    %125 = vmatprep.subr.mxu0 0.0
    %126 = vmatpush1.msra.mxu0 0.0
    %127 = vmatprep.subr.mxu0 0.0
    %128 = vmatpush1.msra.mxu0 0.0
    %129 = vmatprep.subr.mxu0 0.0
    %130 = vmatpush1.msra.mxu0 0.0
    %131 = vmatprep.subr.mxu0 0.0
    %132 = vmatpush1.msra.mxu0 0.0
    %133 = vmatprep.subr.mxu0 0.0
    %134 = vmatpush1.msra.mxu0 0.0
    %135 = vmatprep.subr.mxu0 0.0
    %136 = vmatpush1.msra.mxu0 0.0
    %137 = vmatprep.subr.mxu0 0.0
    %138 = vmatpush1.msra.mxu0 0.0
    %139 = vmatprep.subr.mxu0 0.0
    %140 = vmatpush1.msra.mxu0 0.0
    %141 = vmatprep.subr.mxu0 0.0
    %142 = vmatpush1.msra.mxu0 0.0
    %143 = vmatprep.subr.mxu0 0.0
    %144 = vmatpush1.msra.mxu0 0.0
    %145 = vmatprep.subr.mxu0 0.0
    %146 = vmatpush1.msra.mxu0 0.0
    %147 = vmatprep.subr.mxu0 0.0
    %148 = vmatpush1.msra.mxu0 0.0
    %149 = vmatprep.mubr.f32.mxu0 0.0
    %v150 = vand.u32 %v72, 4294901760
    %v151 = vsub.f32 %v72, %v150
    %v152 = vand.u32 %v151, 4294901760
    %v153 = vsub.f32 %v151, %v152
    %v154 = vand.u32 %v153, 4294901760
    %155 = vmatmul.mubr.f32.gmra.mrb[0].mxu0 %v154
    %v156 = vpop.f32.mrb[0].mxu0
    %v157 = vadd.f32 0.0, %v156
    %v158 = vpop.f32.mrb[0].mxu0
    %159 = vmatprep.mubr.f32.mxu0 0.0
    %v160 = vand.u32 %v75, 4294901760
    %v161 = vsub.f32 %v75, %v160
    %v162 = vand.u32 %v161, 4294901760
    %v163 = vsub.f32 %v161, %v162
    %v164 = vand.u32 %v163, 4294901760
    %165 = vmatmul.mubr.f32.gmra.mrb[0].mxu0 %v164
    %v166 = vpop.f32.mrb[0].mxu0
    %v167 = vadd.f32 0.0, %v166
    %v168 = vpop.f32.mrb[0].mxu0
    %169 = vdwg.mxu0
    %170 = vmatprep.subr.mxu0 0.0
    %v171 = vand.u32 %v62, 4294901760
    %v172 = vsub.f32 %v62, %v171
    %v173 = vand.u32 %v172, 4294901760
    %v174 = vsub.f32 %v172, %v173
    %v175 = vand.u32 %v174, 4294901760
    %176 = vmatpush1.msra.mxu0 %v175
    %177 = vmatprep.subr.mxu0 0.0
    %v178 = vand.u32 %v63, 4294901760
    %v179 = vsub.f32 %v63, %v178
    %v180 = vand.u32 %v179, 4294901760
    %v181 = vsub.f32 %v179, %v180
    %v182 = vand.u32 %v181, 4294901760
    %183 = vmatpush1.msra.mxu0 %v182
    %184 = vmatprep.subr.mxu0 0.0
    %v185 = vand.u32 %v64, 4294901760
    %v186 = vsub.f32 %v64, %v185
    %v187 = vand.u32 %v186, 4294901760
    %v188 = vsub.f32 %v186, %v187
    %v189 = vand.u32 %v188, 4294901760
    %190 = vmatpush1.msra.mxu0 %v189
    %191 = vmatprep.subr.mxu0 0.0
    %v192 = vand.u32 %v65, 4294901760
    %v193 = vsub.f32 %v65, %v192
    %v194 = vand.u32 %v193, 4294901760
    %v195 = vsub.f32 %v193, %v194
    %v196 = vand.u32 %v195, 4294901760
    %197 = vmatpush1.msra.mxu0 %v196
    %198 = vmatprep.subr.mxu0 0.0
    %v199 = vand.u32 %v66, 4294901760
    %v200 = vsub.f32 %v66, %v199
    %v201 = vand.u32 %v200, 4294901760
    %v202 = vsub.f32 %v200, %v201
    %v203 = vand.u32 %v202, 4294901760
    %204 = vmatpush1.msra.mxu0 %v203
    %205 = vmatprep.subr.mxu0 0.0
    %v206 = vand.u32 %v67, 4294901760
    %v207 = vsub.f32 %v67, %v206
    %v208 = vand.u32 %v207, 4294901760
    %v209 = vsub.f32 %v207, %v208
    %v210 = vand.u32 %v209, 4294901760
    %211 = vmatpush1.msra.mxu0 %v210
    %212 = vmatprep.subr.mxu0 0.0
    %v213 = vand.u32 %v68, 4294901760
    %v214 = vsub.f32 %v68, %v213
    %v215 = vand.u32 %v214, 4294901760
    %v216 = vsub.f32 %v214, %v215
    %v217 = vand.u32 %v216, 4294901760
    %218 = vmatpush1.msra.mxu0 %v217
    %219 = vmatprep.subr.mxu0 0.0
    %v220 = vand.u32 %v69, 4294901760
    %v221 = vsub.f32 %v69, %v220
    %v222 = vand.u32 %v221, 4294901760
    %v223 = vsub.f32 %v221, %v222
    %v224 = vand.u32 %v223, 4294901760
    %225 = vmatpush1.msra.mxu0 %v224
    %226 = vmatprep.subr.mxu0 0.0
    %227 = vmatpush1.msra.mxu0 0.0
    %228 = vmatprep.subr.mxu0 0.0
    %229 = vmatpush1.msra.mxu0 0.0
    %230 = vmatprep.subr.mxu0 0.0
    %231 = vmatpush1.msra.mxu0 0.0
    %232 = vmatprep.subr.mxu0 0.0
    %233 = vmatpush1.msra.mxu0 0.0
    %234 = vmatprep.subr.mxu0 0.0
    %235 = vmatpush1.msra.mxu0 0.0
    %236 = vmatprep.subr.mxu0 0.0
    %237 = vmatpush1.msra.mxu0 0.0
    %238 = vmatprep.subr.mxu0 0.0
    %239 = vmatpush1.msra.mxu0 0.0
    %240 = vmatprep.subr.mxu0 0.0
    %241 = vmatpush1.msra.mxu0 0.0
    %242 = vmatprep.subr.mxu0 0.0
    %243 = vmatpush1.msra.mxu0 0.0
    %244 = vmatprep.subr.mxu0 0.0
    %245 = vmatpush1.msra.mxu0 0.0
    %246 = vmatprep.subr.mxu0 0.0
    %247 = vmatpush1.msra.mxu0 0.0
    %248 = vmatprep.subr.mxu0 0.0
    %249 = vmatpush1.msra.mxu0 0.0
    %250 = vmatprep.subr.mxu0 0.0
    %251 = vmatpush1.msra.mxu0 0.0
    %252 = vmatprep.subr.mxu0 0.0
    %253 = vmatpush1.msra.mxu0 0.0
    %254 = vmatprep.subr.mxu0 0.0
    %255 = vmatpush1.msra.mxu0 0.0
    %256 = vmatprep.subr.mxu0 0.0
    %257 = vmatpush1.msra.mxu0 0.0
    %258 = vmatprep.subr.mxu0 0.0
    %259 = vmatpush1.msra.mxu0 0.0
    %260 = vmatprep.subr.mxu0 0.0
    %261 = vmatpush1.msra.mxu0 0.0
    %262 = vmatprep.subr.mxu0 0.0
    %263 = vmatpush1.msra.mxu0 0.0
    %264 = vmatprep.subr.mxu0 0.0
    %265 = vmatpush1.msra.mxu0 0.0
    %266 = vmatprep.subr.mxu0 0.0
    %267 = vmatpush1.msra.mxu0 0.0
    %268 = vmatprep.subr.mxu0 0.0
    %269 = vmatpush1.msra.mxu0 0.0
    %270 = vmatprep.subr.mxu0 0.0
    %271 = vmatpush1.msra.mxu0 0.0
    %272 = vmatprep.subr.mxu0 0.0
    %273 = vmatpush1.msra.mxu0 0.0
    %274 = vmatprep.mubr.f32.mxu0 0.0
    %v275 = vand.u32 %v72, 4294901760
    %276 = vmatmul.mubr.f32.gmra.mrb[0].mxu0 %v275
    %v277 = vpop.f32.mrb[0].mxu0
    %v278 = vadd.f32 %v157, %v277
    %v279 = vpop.f32.mrb[0].mxu0
    %280 = vmatprep.mubr.f32.mxu0 0.0
    %v281 = vand.u32 %v75, 4294901760
    %282 = vmatmul.mubr.f32.gmra.mrb[0].mxu0 %v281
    %v283 = vpop.f32.mrb[0].mxu0
    %v284 = vadd.f32 %v167, %v283
    %v285 = vpop.f32.mrb[0].mxu0
    %286 = vdwg.mxu0
    %287 = vmatprep.subr.mxu0 0.0
    %v288 = vand.u32 %v62, 4294901760
    %v289 = vsub.f32 %v62, %v288
    %290 = vmatpush1.msra.mxu0 %v289
    %291 = vmatprep.subr.mxu0 0.0
    %v292 = vand.u32 %v63, 4294901760
    %v293 = vsub.f32 %v63, %v292
    %294 = vmatpush1.msra.mxu0 %v293
    %295 = vmatprep.subr.mxu0 0.0
    %v296 = vand.u32 %v64, 4294901760
    %v297 = vsub.f32 %v64, %v296
    %298 = vmatpush1.msra.mxu0 %v297
    %299 = vmatprep.subr.mxu0 0.0
    %v300 = vand.u32 %v65, 4294901760
    %v301 = vsub.f32 %v65, %v300
    %302 = vmatpush1.msra.mxu0 %v301
    %303 = vmatprep.subr.mxu0 0.0
    %v304 = vand.u32 %v66, 4294901760
    %v305 = vsub.f32 %v66, %v304
    %306 = vmatpush1.msra.mxu0 %v305
    %307 = vmatprep.subr.mxu0 0.0
    %v308 = vand.u32 %v67, 4294901760
    %v309 = vsub.f32 %v67, %v308
    %310 = vmatpush1.msra.mxu0 %v309
    %311 = vmatprep.subr.mxu0 0.0
    %v312 = vand.u32 %v68, 4294901760
    %v313 = vsub.f32 %v68, %v312
    %314 = vmatpush1.msra.mxu0 %v313
    %315 = vmatprep.subr.mxu0 0.0
    %v316 = vand.u32 %v69, 4294901760
    %v317 = vsub.f32 %v69, %v316
    %318 = vmatpush1.msra.mxu0 %v317
    %319 = vmatprep.subr.mxu0 0.0
    %320 = vmatpush1.msra.mxu0 0.0
    %321 = vmatprep.subr.mxu0 0.0
    %322 = vmatpush1.msra.mxu0 0.0
    %323 = vmatprep.subr.mxu0 0.0
    %324 = vmatpush1.msra.mxu0 0.0
    %325 = vmatprep.subr.mxu0 0.0
    %326 = vmatpush1.msra.mxu0 0.0
    %327 = vmatprep.subr.mxu0 0.0
    %328 = vmatpush1.msra.mxu0 0.0
    %329 = vmatprep.subr.mxu0 0.0
    %330 = vmatpush1.msra.mxu0 0.0
    %331 = vmatprep.subr.mxu0 0.0
    %332 = vmatpush1.msra.mxu0 0.0
    %333 = vmatprep.subr.mxu0 0.0
    %334 = vmatpush1.msra.mxu0 0.0
    %335 = vmatprep.subr.mxu0 0.0
    %336 = vmatpush1.msra.mxu0 0.0
    %337 = vmatprep.subr.mxu0 0.0
    %338 = vmatpush1.msra.mxu0 0.0
    %339 = vmatprep.subr.mxu0 0.0
    %340 = vmatpush1.msra.mxu0 0.0
    %341 = vmatprep.subr.mxu0 0.0
    %342 = vmatpush1.msra.mxu0 0.0
    %343 = vmatprep.subr.mxu0 0.0
    %344 = vmatpush1.msra.mxu0 0.0
    %345 = vmatprep.subr.mxu0 0.0
    %346 = vmatpush1.msra.mxu0 0.0
    %347 = vmatprep.subr.mxu0 0.0
    %348 = vmatpush1.msra.mxu0 0.0
    %349 = vmatprep.subr.mxu0 0.0
    %350 = vmatpush1.msra.mxu0 0.0
    %351 = vmatprep.subr.mxu0 0.0
    %352 = vmatpush1.msra.mxu0 0.0
    %353 = vmatprep.subr.mxu0 0.0
    %354 = vmatpush1.msra.mxu0 0.0
    %355 = vmatprep.subr.mxu0 0.0
    %356 = vmatpush1.msra.mxu0 0.0
    %357 = vmatprep.subr.mxu0 0.0
    %358 = vmatpush1.msra.mxu0 0.0
    %359 = vmatprep.subr.mxu0 0.0
    %360 = vmatpush1.msra.mxu0 0.0
    %361 = vmatprep.subr.mxu0 0.0
    %362 = vmatpush1.msra.mxu0 0.0
    %363 = vmatprep.subr.mxu0 0.0
    %364 = vmatpush1.msra.mxu0 0.0
    %365 = vmatprep.subr.mxu0 0.0
    %366 = vmatpush1.msra.mxu0 0.0
    %367 = vmatprep.mubr.f32.mxu0 0.0
    %v368 = vand.u32 %v72, 4294901760
    %v369 = vsub.f32 %v72, %v368
    %370 = vmatmul.mubr.f32.gmra.mrb[0].mxu0 %v369
    %v371 = vpop.f32.mrb[0].mxu0
    %v372 = vadd.f32 %v278, %v371
    %v373 = vpop.f32.mrb[0].mxu0
    %374 = vmatprep.mubr.f32.mxu0 0.0
    %v375 = vand.u32 %v75, 4294901760
    %v376 = vsub.f32 %v75, %v375
    %377 = vmatmul.mubr.f32.gmra.mrb[0].mxu0 %v376
    %v378 = vpop.f32.mrb[0].mxu0
    %v379 = vadd.f32 %v284, %v378
    %v380 = vpop.f32.mrb[0].mxu0
    %381 = vdwg.mxu0
    %382 = vmatprep.subr.mxu0 0.0
    %v383 = vand.u32 %v62, 4294901760
    %384 = vmatpush1.msra.mxu0 %v383
    %385 = vmatprep.subr.mxu0 0.0
    %v386 = vand.u32 %v63, 4294901760
    %387 = vmatpush1.msra.mxu0 %v386
    %388 = vmatprep.subr.mxu0 0.0
    %v389 = vand.u32 %v64, 4294901760
    %390 = vmatpush1.msra.mxu0 %v389
    %391 = vmatprep.subr.mxu0 0.0
    %v392 = vand.u32 %v65, 4294901760
    %393 = vmatpush1.msra.mxu0 %v392
    %394 = vmatprep.subr.mxu0 0.0
    %v395 = vand.u32 %v66, 4294901760
    %396 = vmatpush1.msra.mxu0 %v395
    %397 = vmatprep.subr.mxu0 0.0
    %v398 = vand.u32 %v67, 4294901760
    %399 = vmatpush1.msra.mxu0 %v398
    %400 = vmatprep.subr.mxu0 0.0
    %v401 = vand.u32 %v68, 4294901760
    %402 = vmatpush1.msra.mxu0 %v401
    %403 = vmatprep.subr.mxu0 0.0
    %v404 = vand.u32 %v69, 4294901760
    %405 = vmatpush1.msra.mxu0 %v404
    %406 = vmatprep.subr.mxu0 0.0
    %407 = vmatpush1.msra.mxu0 0.0
    %408 = vmatprep.subr.mxu0 0.0
    %409 = vmatpush1.msra.mxu0 0.0
    %410 = vmatprep.subr.mxu0 0.0
    %411 = vmatpush1.msra.mxu0 0.0
    %412 = vmatprep.subr.mxu0 0.0
    %413 = vmatpush1.msra.mxu0 0.0
    %414 = vmatprep.subr.mxu0 0.0
    %415 = vmatpush1.msra.mxu0 0.0
    %416 = vmatprep.subr.mxu0 0.0
    %417 = vmatpush1.msra.mxu0 0.0
    %418 = vmatprep.subr.mxu0 0.0
    %419 = vmatpush1.msra.mxu0 0.0
    %420 = vmatprep.subr.mxu0 0.0
    %421 = vmatpush1.msra.mxu0 0.0
    %422 = vmatprep.subr.mxu0 0.0
    %423 = vmatpush1.msra.mxu0 0.0
    %424 = vmatprep.subr.mxu0 0.0
    %425 = vmatpush1.msra.mxu0 0.0
    %426 = vmatprep.subr.mxu0 0.0
    %427 = vmatpush1.msra.mxu0 0.0
    %428 = vmatprep.subr.mxu0 0.0
    %429 = vmatpush1.msra.mxu0 0.0
    %430 = vmatprep.subr.mxu0 0.0
    %431 = vmatpush1.msra.mxu0 0.0
    %432 = vmatprep.subr.mxu0 0.0
    %433 = vmatpush1.msra.mxu0 0.0
    %434 = vmatprep.subr.mxu0 0.0
    %435 = vmatpush1.msra.mxu0 0.0
    %436 = vmatprep.subr.mxu0 0.0
    %437 = vmatpush1.msra.mxu0 0.0
    %438 = vmatprep.subr.mxu0 0.0
    %439 = vmatpush1.msra.mxu0 0.0
    %440 = vmatprep.subr.mxu0 0.0
    %441 = vmatpush1.msra.mxu0 0.0
    %442 = vmatprep.subr.mxu0 0.0
    %443 = vmatpush1.msra.mxu0 0.0
    %444 = vmatprep.subr.mxu0 0.0
    %445 = vmatpush1.msra.mxu0 0.0
    %446 = vmatprep.subr.mxu0 0.0
    %447 = vmatpush1.msra.mxu0 0.0
    %448 = vmatprep.subr.mxu0 0.0
    %449 = vmatpush1.msra.mxu0 0.0
    %450 = vmatprep.subr.mxu0 0.0
    %451 = vmatpush1.msra.mxu0 0.0
    %452 = vmatprep.subr.mxu0 0.0
    %453 = vmatpush1.msra.mxu0 0.0
    %454 = vmatprep.mubr.f32.mxu0 0.0
    %v455 = vand.u32 %v72, 4294901760
    %v456 = vsub.f32 %v72, %v455
    %v457 = vand.u32 %v456, 4294901760
    %458 = vmatmul.mubr.f32.gmra.mrb[0].mxu0 %v457
    %v459 = vpop.f32.mrb[0].mxu0
    %v460 = vadd.f32 %v372, %v459
    %v461 = vpop.f32.mrb[0].mxu0
    %462 = vmatprep.mubr.f32.mxu0 0.0
    %v463 = vand.u32 %v75, 4294901760
    %v464 = vsub.f32 %v75, %v463
    %v465 = vand.u32 %v464, 4294901760
    %466 = vmatmul.mubr.f32.gmra.mrb[0].mxu0 %v465
    %v467 = vpop.f32.mrb[0].mxu0
    %v468 = vadd.f32 %v379, %v467
    %v469 = vpop.f32.mrb[0].mxu0
    %470 = vdwg.mxu0
    %471 = vmatprep.subr.mxu0 0.0
    %v472 = vand.u32 %v62, 4294901760
    %v473 = vsub.f32 %v62, %v472
    %v474 = vand.u32 %v473, 4294901760
    %475 = vmatpush1.msra.mxu0 %v474
    %476 = vmatprep.subr.mxu0 0.0
    %v477 = vand.u32 %v63, 4294901760
    %v478 = vsub.f32 %v63, %v477
    %v479 = vand.u32 %v478, 4294901760
    %480 = vmatpush1.msra.mxu0 %v479
    %481 = vmatprep.subr.mxu0 0.0
    %v482 = vand.u32 %v64, 4294901760
    %v483 = vsub.f32 %v64, %v482
    %v484 = vand.u32 %v483, 4294901760
    %485 = vmatpush1.msra.mxu0 %v484
    %486 = vmatprep.subr.mxu0 0.0
    %v487 = vand.u32 %v65, 4294901760
    %v488 = vsub.f32 %v65, %v487
    %v489 = vand.u32 %v488, 4294901760
    %490 = vmatpush1.msra.mxu0 %v489
    %491 = vmatprep.subr.mxu0 0.0
    %v492 = vand.u32 %v66, 4294901760
    %v493 = vsub.f32 %v66, %v492
    %v494 = vand.u32 %v493, 4294901760
    %495 = vmatpush1.msra.mxu0 %v494
    %496 = vmatprep.subr.mxu0 0.0
    %v497 = vand.u32 %v67, 4294901760
    %v498 = vsub.f32 %v67, %v497
    %v499 = vand.u32 %v498, 4294901760
    %500 = vmatpush1.msra.mxu0 %v499
    %501 = vmatprep.subr.mxu0 0.0
    %v502 = vand.u32 %v68, 4294901760
    %v503 = vsub.f32 %v68, %v502
    %v504 = vand.u32 %v503, 4294901760
    %505 = vmatpush1.msra.mxu0 %v504
    %506 = vmatprep.subr.mxu0 0.0
    %v507 = vand.u32 %v69, 4294901760
    %v508 = vsub.f32 %v69, %v507
    %v509 = vand.u32 %v508, 4294901760
    %510 = vmatpush1.msra.mxu0 %v509
    %511 = vmatprep.subr.mxu0 0.0
    %512 = vmatpush1.msra.mxu0 0.0
    %513 = vmatprep.subr.mxu0 0.0
    %514 = vmatpush1.msra.mxu0 0.0
    %515 = vmatprep.subr.mxu0 0.0
    %516 = vmatpush1.msra.mxu0 0.0
    %517 = vmatprep.subr.mxu0 0.0
    %518 = vmatpush1.msra.mxu0 0.0
    %519 = vmatprep.subr.mxu0 0.0
    %520 = vmatpush1.msra.mxu0 0.0
    %521 = vmatprep.subr.mxu0 0.0
    %522 = vmatpush1.msra.mxu0 0.0
    %523 = vmatprep.subr.mxu0 0.0
    %524 = vmatpush1.msra.mxu0 0.0
    %525 = vmatprep.subr.mxu0 0.0
    %526 = vmatpush1.msra.mxu0 0.0
    %527 = vmatprep.subr.mxu0 0.0
    %528 = vmatpush1.msra.mxu0 0.0
    %529 = vmatprep.subr.mxu0 0.0
    %530 = vmatpush1.msra.mxu0 0.0
    %531 = vmatprep.subr.mxu0 0.0
    %532 = vmatpush1.msra.mxu0 0.0
    %533 = vmatprep.subr.mxu0 0.0
    %534 = vmatpush1.msra.mxu0 0.0
    %535 = vmatprep.subr.mxu0 0.0
    %536 = vmatpush1.msra.mxu0 0.0
    %537 = vmatprep.subr.mxu0 0.0
    %538 = vmatpush1.msra.mxu0 0.0
    %539 = vmatprep.subr.mxu0 0.0
    %540 = vmatpush1.msra.mxu0 0.0
    %541 = vmatprep.subr.mxu0 0.0
    %542 = vmatpush1.msra.mxu0 0.0
    %543 = vmatprep.subr.mxu0 0.0
    %544 = vmatpush1.msra.mxu0 0.0
    %545 = vmatprep.subr.mxu0 0.0
    %546 = vmatpush1.msra.mxu0 0.0
    %547 = vmatprep.subr.mxu0 0.0
    %548 = vmatpush1.msra.mxu0 0.0
    %549 = vmatprep.subr.mxu0 0.0
    %550 = vmatpush1.msra.mxu0 0.0
    %551 = vmatprep.subr.mxu0 0.0
    %552 = vmatpush1.msra.mxu0 0.0
    %553 = vmatprep.subr.mxu0 0.0
    %554 = vmatpush1.msra.mxu0 0.0
    %555 = vmatprep.subr.mxu0 0.0
    %556 = vmatpush1.msra.mxu0 0.0
    %557 = vmatprep.subr.mxu0 0.0
    %558 = vmatpush1.msra.mxu0 0.0
    %559 = vmatprep.mubr.f32.mxu0 0.0
    %v560 = vand.u32 %v72, 4294901760
    %561 = vmatmul.mubr.f32.gmra.mrb[0].mxu0 %v560
    %v562 = vpop.f32.mrb[0].mxu0
    %v563 = vadd.f32 %v460, %v562
    %v564 = vpop.f32.mrb[0].mxu0
    %565 = vmatprep.mubr.f32.mxu0 0.0
    %v566 = vand.u32 %v75, 4294901760
    %567 = vmatmul.mubr.f32.gmra.mrb[0].mxu0 %v566
    %v568 = vpop.f32.mrb[0].mxu0
    %v569 = vadd.f32 %v468, %v568
    %v570 = vpop.f32.mrb[0].mxu0
    %571 = vdwg.mxu0
    %572 = vmatprep.subr.mxu0 0.0
    %v573 = vand.u32 %v62, 4294901760
    %574 = vmatpush1.msra.mxu0 %v573
    %575 = vmatprep.subr.mxu0 0.0
    %v576 = vand.u32 %v63, 4294901760
    %577 = vmatpush1.msra.mxu0 %v576
    %578 = vmatprep.subr.mxu0 0.0
    %v579 = vand.u32 %v64, 4294901760
    %580 = vmatpush1.msra.mxu0 %v579
    %581 = vmatprep.subr.mxu0 0.0
    %v582 = vand.u32 %v65, 4294901760
    %583 = vmatpush1.msra.mxu0 %v582
    %584 = vmatprep.subr.mxu0 0.0
    %v585 = vand.u32 %v66, 4294901760
    %586 = vmatpush1.msra.mxu0 %v585
    %587 = vmatprep.subr.mxu0 0.0
    %v588 = vand.u32 %v67, 4294901760
    %589 = vmatpush1.msra.mxu0 %v588
    %590 = vmatprep.subr.mxu0 0.0
    %v591 = vand.u32 %v68, 4294901760
    %592 = vmatpush1.msra.mxu0 %v591
    %593 = vmatprep.subr.mxu0 0.0
    %v594 = vand.u32 %v69, 4294901760
    %595 = vmatpush1.msra.mxu0 %v594
    %596 = vmatprep.subr.mxu0 0.0
    %597 = vmatpush1.msra.mxu0 0.0
    %598 = vmatprep.subr.mxu0 0.0
    %599 = vmatpush1.msra.mxu0 0.0
    %600 = vmatprep.subr.mxu0 0.0
    %601 = vmatpush1.msra.mxu0 0.0
    %602 = vmatprep.subr.mxu0 0.0
    %603 = vmatpush1.msra.mxu0 0.0
    %604 = vmatprep.subr.mxu0 0.0
    %605 = vmatpush1.msra.mxu0 0.0
    %606 = vmatprep.subr.mxu0 0.0
    %607 = vmatpush1.msra.mxu0 0.0
    %608 = vmatprep.subr.mxu0 0.0
    %609 = vmatpush1.msra.mxu0 0.0
    %610 = vmatprep.subr.mxu0 0.0
    %611 = vmatpush1.msra.mxu0 0.0
    %612 = vmatprep.subr.mxu0 0.0
    %613 = vmatpush1.msra.mxu0 0.0
    %614 = vmatprep.subr.mxu0 0.0
    %615 = vmatpush1.msra.mxu0 0.0
    %616 = vmatprep.subr.mxu0 0.0
    %617 = vmatpush1.msra.mxu0 0.0
    %618 = vmatprep.subr.mxu0 0.0
    %619 = vmatpush1.msra.mxu0 0.0
    %620 = vmatprep.subr.mxu0 0.0
    %621 = vmatpush1.msra.mxu0 0.0
    %622 = vmatprep.subr.mxu0 0.0
    %623 = vmatpush1.msra.mxu0 0.0
    %624 = vmatprep.subr.mxu0 0.0
    %625 = vmatpush1.msra.mxu0 0.0
    %626 = vmatprep.subr.mxu0 0.0
    %627 = vmatpush1.msra.mxu0 0.0
    %628 = vmatprep.subr.mxu0 0.0
    %629 = vmatpush1.msra.mxu0 0.0
    %630 = vmatprep.subr.mxu0 0.0
    %631 = vmatpush1.msra.mxu0 0.0
    %632 = vmatprep.subr.mxu0 0.0
    %633 = vmatpush1.msra.mxu0 0.0
    %634 = vmatprep.subr.mxu0 0.0
    %635 = vmatpush1.msra.mxu0 0.0
    %636 = vmatprep.subr.mxu0 0.0
    %637 = vmatpush1.msra.mxu0 0.0
    %638 = vmatprep.subr.mxu0 0.0
    %639 = vmatpush1.msra.mxu0 0.0
    %640 = vmatprep.subr.mxu0 0.0
    %641 = vmatpush1.msra.mxu0 0.0
    %642 = vmatprep.subr.mxu0 0.0
    %643 = vmatpush1.msra.mxu0 0.0
    %644 = vmatprep.mubr.f32.mxu0 0.0
    %v645 = vand.u32 %v72, 4294901760
    %646 = vmatmul.mubr.f32.gmra.mrb[0].mxu0 %v645
    %v647 = vpop.f32.mrb[0].mxu0
    %v648 = vadd.f32 %v563, %v647
    %v649 = vpop.f32.mrb[0].mxu0
    %650 = vmatprep.mubr.f32.mxu0 0.0
    %v651 = vand.u32 %v75, 4294901760
    %652 = vmatmul.mubr.f32.gmra.mrb[0].mxu0 %v651
    %v653 = vpop.f32.mrb[0].mxu0
    %v654 = vadd.f32 %v569, %v653
    %v655 = vpop.f32.mrb[0].mxu0
    %656 = vdwg.mxu0
    %v657 = vmul.f32 %v648, 11.313708
    %v658 = vmul.f32 %v654, 11.313708
    %659 = vst [vmem:[#allocation7] sm:$0xff] %v657
    %660 = vst [vmem:[#allocation7 + $0x8] sm:$0xff] %v658
    // Predicated region
    $region18: #{tpu_custom_call.1} parent=1 // pred_check
      _
    $region19: #{tpu_custom_call.1} parent=1 // pred_check_branch
      %662 = sbr.rel (0) target = $region21
    $region20: #{tpu_custom_call.1} parent=1 // pred_region
      %s664 = ssub.s32 256, 256
      %665 = vsyncadd [#allocation4], %s664
      %s666 = sshll.u32 [#allocation7], 4
      %s667 = int_to_ptr.vmem [resolvable:$true] %s666
      %672 = dma.vmem_to_hbm [thread:$0]  %s667, 256, %s2, [#allocation4], 128, 128, 8
    $region21: #{tpu_custom_call.1} parent=1 // pred_fallthru
      _
    // Predicated region
    $region22: #{tpu_custom_call.1} parent=1 // pred_check
      _
    $region23: #{tpu_custom_call.1} parent=1 // pred_check_branch
      %674 = sbr.rel (0) target = $region25
    $region24: #{tpu_custom_call.1} parent=1 // pred_region
      %675 = dma.done [#allocation4], 256
    $region25: #{tpu_custom_call.1} parent=1 // pred_fallthru
      _
    %676 = vsyncpa [#allocation3], 1
    %677 = vsyncpa [#allocation6], 1
    %678 = vsyncpa [#allocation4], 1

</llo_original>
